<compile_context>
chip_gen: v5e
topology: v5e:2x2
jax: 0.10.0
libtpu: 0.0.40
codegen_flags: <defaults>
</compile_context>

<pallas_src>
import functools

import jax
import jax.numpy as jnp
from jax import lax
from jax.experimental import pallas as pl
from jax.experimental.pallas import tpu as pltpu

_LANE = 128                      # the 2-D view is always (rows, 128)
_ACC_ROWS = 256                  # accumulator height: (256, 128) f32 = 128 KiB
_MIN_PALLAS_ELEMS = 64 * 1024    # below this, plain XLA beats the launch cost


def _device_kind():
    try:
        return jax.devices()[0].device_kind.lower()
    except Exception:  # pragma: no cover
        return ""


def _num_tensorcores():
    # 2-way megacore split only where it exists (v7x: 2 TCs/chip).  On 1-TC
    # chips a size-2 "parallel" axis is just a sequential second pass.
    return 2 if "v7" in _device_kind() else 1


def _default_block_bytes():
    kind = _device_kind()
    if "v7" in kind:
        return 8 * 1024 * 1024   # ~3.2 TB/s HBM: amortize the ~0.35 us/step cost
    return 4 * 1024 * 1024       # v6e/v5e: 2 x 4 MiB buffers + 128 KiB acc fit
                                 # comfortably under the 16 MiB scoped default


# ---------------------------------------------------------------------------
# Kernels
# ---------------------------------------------------------------------------

def _sumsq_single_kernel(x_ref, o_ref):
    """Whole array is one block: o[0, 0] = sum(x^2)."""
    x = x_ref[...].astype(jnp.float32)
    o_ref[0, 0] = jnp.sum(x * x)


def _sumsq_tiled_kernel(x_ref, o_ref, acc_ref, *, nrows, bpc, any_partial):
    """Accumulates sum(x^2) of this core's blocks into o_ref[core, 0].

    Grid = (ncores, blocks_per_core); the second axis is the reduction axis.
    acc_ref is a small (ACC_ROWS, 128) f32 running accumulator; each block is
    folded into it in ACC_ROWS-row chunks (pure VPU work, no per-step XLU).
    """
    tm, _ = x_ref.shape
    acc_rows = acc_ref.shape[0]
    nchunks = tm // acc_rows

    c = pl.program_id(0)             # megacore ("parallel") axis
    b = pl.program_id(1)             # reduction ("arbitrary") axis
    nb = pl.num_programs(1)

    @pl.when(b == 0)
    def _init():
        acc_ref[...] = jnp.zeros_like(acc_ref)

    gb = c * bpc + b                 # unclamped global block index
    row0 = gb * tm                   # first (unclamped) global row of this block

    def _for_each_chunk(body):
        if nchunks == 1:
            body(0)
        else:
            pl.loop(0, nchunks)(body)

    def _accum_chunk(i, mask_rows):
        start = i * acc_rows
        if not isinstance(start, int):
            start = pl.multiple_of(start, acc_rows)
        x = x_ref[pl.ds(start, acc_rows), :].astype(jnp.float32)
        if mask_rows:
            # Mask BEFORE squaring: OOB rows of a partial block hold stale
            # VMEM garbage (possibly NaN).
            row = row0 + i * acc_rows + lax.broadcasted_iota(
                jnp.int32, x.shape, 0)
            x = jnp.where(row < nrows, x, 0.0)
        acc_ref[...] += x * x

    if any_partial:
        n_full = nrows // tm         # number of blocks fully in-bounds

        @pl.when(gb < n_full)
        def _hot():                  # hot path: no iota/compare/select
            _for_each_chunk(lambda i: _accum_chunk(i, mask_rows=False))

        @pl.when(gb >= n_full)
        def _tail():                 # partial last block and phantom blocks
            _for_each_chunk(lambda i: _accum_chunk(i, mask_rows=True))
    else:
        _for_each_chunk(lambda i: _accum_chunk(i, mask_rows=False))

    @pl.when(b == nb - 1)
    def _finalize():
        o_ref[0, 0] = jnp.sum(acc_ref[...])   # one cross-lane reduce per core


# ---------------------------------------------------------------------------
# Wrappers
# ---------------------------------------------------------------------------

def _sum_of_squares_pallas(x2d, block_bytes):
    """x2d: (R, 128) array. Returns scalar f32 sum of all squared elements."""
    R, L = x2d.shape
    elems_per_block = max(_ACC_ROWS * L, block_bytes // x2d.dtype.itemsize)
    tm_max = (elems_per_block // L) // _ACC_ROWS * _ACC_ROWS

    if R <= tm_max:
        # Whole array fits in one block: no scratch, no mask, no reduction axis.
        out = pl.pallas_call(
            _sumsq_single_kernel,
            out_shape=jax.ShapeDtypeStruct((1, 1), jnp.float32),
            grid_spec=pltpu.PrefetchScalarGridSpec(
                num_scalar_prefetch=0,
                grid=(1,),
                in_specs=[pl.BlockSpec((R, L), lambda i: (0, 0))],
                out_specs=pl.BlockSpec((1, 1), lambda i: (0, 0),
                                       memory_space=pltpu.SMEM),
            ),
        )(x2d)
        return out[0, 0]

    tm = tm_max                                  # multiple of _ACC_ROWS (and 8)
    nblocks = pl.cdiv(R, tm)
    ncores = _num_tensorcores()
    bpc = pl.cdiv(nblocks, ncores)               # blocks per core
    any_partial = (ncores * bpc * tm) != R       # partial tail / phantom blocks

    kernel = functools.partial(_sumsq_tiled_kernel,
                               nrows=R, bpc=bpc, any_partial=any_partial)

    out = pl.pallas_call(
        kernel,
        out_shape=jax.ShapeDtypeStruct((ncores, 1), jnp.float32),
        grid_spec=pltpu.PrefetchScalarGridSpec(
            num_scalar_prefetch=0,
            grid=(ncores, bpc),
            in_specs=[pl.BlockSpec(
                (tm, L),
                # Phantom blocks past the real extent are clamped onto the
                # last real block and fully masked away inside the kernel.
                lambda c, b: (jnp.minimum(c * bpc + b, nblocks - 1), 0))],
            out_specs=pl.BlockSpec((1, 1), lambda c, b: (c, 0),
                                   memory_space=pltpu.SMEM),
            scratch_shapes=[pltpu.VMEM((_ACC_ROWS, L), jnp.float32)],
        ),
        compiler_params=pltpu.CompilerParams(
            dimension_semantics=("parallel", "arbitrary")),
    )(x2d)
    return jnp.sum(out)


@functools.partial(jax.custom_vjp, nondiff_argnums=(1,))
def _sum_of_squares(x2d, block_bytes):
    return _sum_of_squares_pallas(x2d, block_bytes)


def _sum_of_squares_fwd(x2d, block_bytes):
    return _sum_of_squares_pallas(x2d, block_bytes), x2d


def _sum_of_squares_bwd(block_bytes, x2d, g):
    # d sum(x^2) / dx = 2x ; g is a scalar cotangent.
    return (((2.0 * g) * x2d.astype(jnp.float32)).astype(x2d.dtype),)


_sum_of_squares.defvjp(_sum_of_squares_fwd, _sum_of_squares_bwd)


def emb_loss(*embeddings, norm=2, block_bytes=None,
             min_pallas_elems=_MIN_PALLAS_ELEMS):
    """Pallas-backed EmbLoss forward: sum_i ||emb_i||_F / emb_i.shape[0]."""
    assert norm == 2, "Only the default norm=2 (Frobenius) is implemented"
    # TODO(synk): arbitrary p-norms (norm != 2) are not implemented.
    if block_bytes is None:
        block_bytes = _default_block_bytes()
    total = jnp.float32(0.0)
    for emb in embeddings:
        n0 = emb.shape[0]
        flat = emb.reshape(-1)               # free view of a contiguous array
        n = flat.shape[0]
        if n % _LANE != 0 or n < max(min_pallas_elems, _LANE):
            # Ragged sizes (a (rows, 128) view would force an HBM copy) and
            # tiny embeddings (launch cost dominates): a fused XLA reduce
            # reads the data exactly once, which is already optimal.
            ss = jnp.sum(jnp.square(flat.astype(jnp.float32)))
        else:
            x2d = flat.reshape(-1, _LANE)    # free view; no pad, no cast in HBM
            ss = _sum_of_squares(x2d, int(block_bytes))
        total = total + jnp.sqrt(ss) / jnp.float32(n0)
    return total


def emb_loss_ref(*embeddings):
    """Pure-JAX reference matching the PyTorch forward."""
    total = jnp.float32(0.0)
    for emb in embeddings:
        total = total + jnp.linalg.norm(
            emb.reshape(-1).astype(jnp.float32)) / emb.shape[0]
    return total


if __name__ == "__main__":
    key = jax.random.PRNGKey(0)
    k1, k2, k3, k4, k5 = jax.random.split(key, 5)

    # Small "embeddings" (EmbLoss takes *embeddings of arbitrary shape).
    emb_a = jax.random.normal(k1, (8, 32), dtype=jnp.float32)      # (users, hidden)
    emb_b = jax.random.normal(k2, (4, 64), dtype=jnp.float32)      # (items, hidden)
    emb_c = jax.random.normal(k3, (2, 4, 16), dtype=jnp.float32)   # (batch, heads, dim)
    emb_d = jax.random.normal(k4, (41, 64), dtype=jnp.float32)     # ragged: 2624 % 128 != 0
    emb_e = jax.random.normal(k5, (600, 128), dtype=jnp.float32)   # big enough to tile

    # 1) Default config on tiny/ragged inputs: plain fused XLA fallback path.
    out0 = jax.block_until_ready(emb_loss(emb_a, emb_b, emb_c, emb_d))
    ref0 = emb_loss_ref(emb_a, emb_b, emb_c, emb_d)
    assert jnp.allclose(out0, ref0, rtol=1e-4, atol=1e-5), (out0, ref0)

    # 2) Force the Pallas single-block kernel on the small inputs.
    out1 = jax.block_until_ready(emb_loss(emb_a, emb_b, emb_c, min_pallas_elems=0))
    ref1 = emb_loss_ref(emb_a, emb_b, emb_c)
    assert jnp.allclose(out1, ref1, rtol=1e-4, atol=1e-5), (out1, ref1)

    # 3) Force the tiled kernel (multi-block + chunked accumulator + masked
    #    partial tail) by shrinking the block to 512 rows (256 KiB).
    small_block = 512 * _LANE * 4
    out2 = jax.block_until_ready(
        emb_loss(emb_e, emb_a, min_pallas_elems=0, block_bytes=small_block))
    ref2 = emb_loss_ref(emb_e, emb_a)
    assert jnp.allclose(out2, ref2, rtol=1e-4, atol=1e-5), (out2, ref2)

    # 4) Gradient through the Pallas path (EmbLoss is a training regularizer).
    loss_fn = lambda e: emb_loss(e, min_pallas_elems=0, block_bytes=small_block)
    g = jax.block_until_ready(jax.grad(loss_fn)(emb_e))
    g_ref = jax.grad(lambda e: emb_loss_ref(e))(emb_e)
    assert jnp.allclose(g, g_ref, rtol=1e-4, atol=1e-9), (g, g_ref)

    print("KERNEL_OK")
</pallas_src>

<mosaic_0001>
module attributes {stable_mosaic.version = 11 : i64} {
  func.func @_sumsq_single_kernel(%arg0: i32, %arg1: memref<2x128xf32, #tpu.memory_space<vmem>>, %arg2: memref<1x1xf32, #tpu.memory_space<smem>>) attributes {dimension_semantics = [#tpu.dimension_semantics<arbitrary>], iteration_bounds = array<i64: 1>, scalar_prefetch = 0 : i64, scratch_operands = 0 : i64, tpu.core_type = #tpu.core_type<tc>, window_params = [{pipeline_mode = #tpu.pipeline_mode<synchronous>, transform_indices = @transform_0, window_bounds = array<i64: 2, 128>}, {transform_indices = @transform_1, window_bounds = array<i64: 1, 1>}]} {
    %c0 = arith.constant 0 : index
    %c0_0 = arith.constant 0 : index
    %0 = vector.load %arg1[%c0, %c0_0] : memref<2x128xf32, #tpu.memory_space<vmem>>, vector<2x128xf32>
    %1 = arith.mulf %0, %0 : vector<2x128xf32>
    %2 = vector.shape_cast %1 : vector<2x128xf32> to vector<1x2x128xf32>
    %cst = arith.constant dense<0.000000e+00> : vector<1xf32>
    %3 = vector.multi_reduction <add>, %2, %cst [1, 2] : vector<1x2x128xf32> to vector<1xf32>
    %4 = vector.shape_cast %3 : vector<1xf32> to vector<1x1x1xf32>
    %5 = vector.extract %4[0, 0, 0] : f32 from vector<1x1x1xf32>
    %c0_1 = arith.constant 0 : index
    %c0_2 = arith.constant 0 : index
    %6 = memref.load %arg2[%c0_1, %c0_2] : memref<1x1xf32, #tpu.memory_space<smem>>
    memref.store %5, %arg2[%c0_1, %c0_2] : memref<1x1xf32, #tpu.memory_space<smem>>
    return
  }
  func.func @transform_0(%arg0: i32) -> (i32, i32) {
    %c0_i32 = arith.constant 0 : i32
    %c0_i32_0 = arith.constant 0 : i32
    %c0_i32_1 = arith.constant 0 : i32
    return %c0_i32, %c0_i32_0 : i32, i32
  }
  func.func @transform_1(%arg0: i32) -> (i32, i32) {
    %c0_i32 = arith.constant 0 : i32
    %c0_i32_0 = arith.constant 0 : i32
    %c0_i32_1 = arith.constant 0 : i32
    return %c0_i32, %c0_i32_0 : i32, i32
  }
}

</mosaic_0001>

<llo_original>
// kernel: tpu_custom_call.1
$region0: #{tpu_custom_call.1}
  #allocation0 [shape = 'u32[]', space=smem, size = 0x4, offset = 0x4, fixed_abs, tag = 'smem constant byte address 0x4 - core index']
  #allocation1 [shape = 'u32[72,128]{1,0:T(1,128)}', space=vmem, size = 0x9000, scoped, tag = 'internal scratch']
  %s0 = inlined_call_operand.hbm [shape: f32[2,128], index: 0, kind: input, shape index: {}]
  %s1 = inlined_call_operand.hbm [shape: f32[1,1], index: 1, kind: output, shape index: {}]
  %s2 = sld [smem:[#allocation0]]
  $region18: #{tpu_custom_call.1} parent=0
    _
  %s4 = ssub.s32 1, %s2
  %s5 = scalar_select 0, %s4, %s2
  $region1: #{tpu_custom_call.1} parent=0
    #allocation2 [shape = 'u8[1024]{0}', space=vmem, size = 0x400, scoped, tag = 'input window, operand 0, single buffered']
    #allocation3 [shape = 's32[1]{0}', space=sflag, size = 0x4, scoped, tag = 'scoped memory for tpu_custom_call.1']
    #allocation4 [shape = 's32[1]{0}', space=sflag, size = 0x4, scoped, tag = 'scoped memory for tpu_custom_call.1']
    #allocation5 [shape = 'u8[512]{0}', space=smem, size = 0x200, scoped, tag = 'output window, operand 0, single buffered']
    %6 = vsyncpa [#allocation3], 0
    %7 = vsyncpa [#allocation4], 0
    // Predicated region
    $region2: #{tpu_custom_call.1} parent=1 // pred_check
      _
    $region3: #{tpu_custom_call.1} parent=1 // pred_check_branch
      %9 = sbr.rel (0) target = $region5
    $region4: #{tpu_custom_call.1} parent=1 // pred_region
      %11 = vsyncadd [#allocation3], 0
      %s13 = sshll.u32 %s0, 4
      %s14 = int_to_ptr.hbm [resolvable:$true] %s13
      %s15 = sshll.u32 [#allocation2], 4
      %s16 = int_to_ptr.vmem [resolvable:$true] %s15
      %18 = dma.hbm_to_vmem [thread:$0]  %s14, 32, %s16, [#allocation3]
    $region5: #{tpu_custom_call.1} parent=1 // pred_fallthru
      _
    // Predicated region
    $region6: #{tpu_custom_call.1} parent=1 // pred_check
      _
    $region7: #{tpu_custom_call.1} parent=1 // pred_check_branch
      %20 = sbr.rel (0) target = $region9
    $region8: #{tpu_custom_call.1} parent=1 // pred_region
      %22 = dma.done [#allocation3], 32
    $region9: #{tpu_custom_call.1} parent=1 // pred_fallthru
      _
    %v23 = vld [vmem:[#allocation2] sm:$0x3]
    %v24 = vmul.f32 %v23, %v23
    %vm25 = vcmask 1041408
    %v26 = vsel %vm25, %v24, 0.0
    %27 = vadd.xlane.f32.xlu0 %v26
    %v28 = vpop.xlane.xlu0 %27
    %v29 = vrot.slane %v28, 4
    %v30 = vadd.f32 %v28, %v29
    %v31 = vrot.slane %v30, 2
    %v32 = vadd.f32 %v30, %v31
    %v33 = vrot.slane %v32, 1
    %v34 = vadd.f32 %v32, %v33
    %s35 = vtos %v34
    %s36 = scalar_lea.smem [#allocation5], 0
    %37 = sst [smem:[%s36]] %s35
    // Predicated region
    $region10: #{tpu_custom_call.1} parent=1 // pred_check
      _
    $region11: #{tpu_custom_call.1} parent=1 // pred_check_branch
      %39 = sbr.rel (0) target = $region13
    $region12: #{tpu_custom_call.1} parent=1 // pred_region
      %41 = vsyncadd [#allocation4], 0
      %s43 = sshll.u32 %s1, 4
      %s44 = int_to_ptr.hbm [resolvable:$true] %s43
      %46 = dma.smem_to_hbm [#allocation5], 16, %s44, [#allocation4]
    $region13: #{tpu_custom_call.1} parent=1 // pred_fallthru
      _
    // Predicated region
    $region14: #{tpu_custom_call.1} parent=1 // pred_check
      _
    $region15: #{tpu_custom_call.1} parent=1 // pred_check_branch
      %48 = sbr.rel (0) target = $region17
    $region16: #{tpu_custom_call.1} parent=1 // pred_region
      %50 = dma.done [#allocation4], 16
    $region17: #{tpu_custom_call.1} parent=1 // pred_fallthru
      _
    %51 = sfence
    %52 = vsyncpa [#allocation3], 1
    %53 = vsyncpa [#allocation4], 1

</llo_original>
